<compile_context>
chip_gen: v6e
topology: v6e:2x2x1
jax: 0.10.0
libtpu: 0.0.40
codegen_flags: <defaults>
</compile_context>

<pallas_src>
import math

import jax
import jax.numpy as jnp
from jax.experimental import pallas as pl
from jax.experimental.pallas import tpu as pltpu


def _round_up(x: int, m: int) -> int:
    return ((x + m - 1) // m) * m


# ----------------------------------------------------------------------------
# Pallas kernel: one fused dot per K step, GLU epilogue on the last K step.
# ----------------------------------------------------------------------------
def _glu_kernel(x_ref, w_ref, b_ref, out_ref, acc_ref):
    k = pl.program_id(2)

    @pl.when(k == 0)
    def _():
        acc_ref[...] = jnp.zeros_like(acc_ref)

    acc_ref[...] += jnp.dot(
        x_ref[...], w_ref[...], preferred_element_type=jnp.float32
    )

    @pl.when(k == pl.num_programs(2) - 1)
    def _():
        th = out_ref.shape[-1]
        acc = acc_ref[...] + b_ref[...]          # bias add in f32
        val = acc[:, :th]
        gate = acc[:, th:]
        out_ref[...] = (val * jax.nn.sigmoid(gate)).astype(out_ref.dtype)


# ----------------------------------------------------------------------------
# One-time parameter layout prep (hoisted out of the forward path).
# ----------------------------------------------------------------------------
def prepare_glu_params(weight, bias, *, block_h: int = 512, block_k: int = 512,
                       compute_dtype=jnp.bfloat16):
    """weight: (2H, D) nn.Linear layout; bias: (2H,).

    Returns a dict with the fused, H-tile-interleaved weight (d_pad, 2*h_pad)
    in `compute_dtype`, an f32 bias (1, 2*h_pad) and tiling metadata.
    """
    two_h, d = weight.shape
    assert two_h % 2 == 0
    h = two_h // 2

    # --- H (output) tiling: th multiple of 128 unless th == full H ----------
    if h <= block_h:
        th, h_pad = h, h
    else:
        th = block_h                      # multiple of 128
        h_pad = _round_up(h, th)

    # --- K (contraction) tiling: tk multiple of 128 unless tk == full D -----
    if d <= block_k:
        tk, d_pad = d, d
    else:
        d_pad = _round_up(d, 128)         # pad D only to 128, not to tk
        tk = 128
        for cand in range(block_k, 127, -128):
            if d_pad % cand == 0:
                tk = cand
                break

    wa = weight[:h].T                     # (D, H) value half
    wb = weight[h:].T                     # (D, H) gate  half
    ba = bias[:h]
    bb = bias[h:]
    if h_pad != h:
        wa = jnp.pad(wa, ((0, 0), (0, h_pad - h)))
        wb = jnp.pad(wb, ((0, 0), (0, h_pad - h)))
        ba = jnp.pad(ba, (0, h_pad - h))
        bb = jnp.pad(bb, (0, h_pad - h))
    if d_pad != d:
        wa = jnp.pad(wa, ((0, d_pad - d), (0, 0)))
        wb = jnp.pad(wb, ((0, d_pad - d), (0, 0)))

    nj = h_pad // th
    # Interleave per H tile: [v_tile0 | g_tile0 | v_tile1 | g_tile1 | ...]
    wf = jnp.stack(
        [wa.reshape(d_pad, nj, th), wb.reshape(d_pad, nj, th)], axis=2
    ).reshape(d_pad, 2 * h_pad).astype(compute_dtype)
    bf = jnp.stack(
        [ba.reshape(nj, th), bb.reshape(nj, th)], axis=1
    ).reshape(1, 2 * h_pad).astype(jnp.float32)

    return dict(w=wf, b=bf, d=d, d_pad=d_pad, tk=tk, h=h, h_pad=h_pad, th=th,
                compute_dtype=compute_dtype)


# ----------------------------------------------------------------------------
# Forward wrapper.
# ----------------------------------------------------------------------------
def gated_linear_unit(x, params, *, block_n: int = 512):
    """x: (..., D) -> (..., H) using pre-laid-out params from prepare_glu_params."""
    d, d_pad, tk = params["d"], params["d_pad"], params["tk"]
    h, h_pad, th = params["h"], params["h_pad"], params["th"]
    wf, bf = params["w"], params["b"]
    compute_dtype = params["compute_dtype"]

    orig_shape = x.shape
    assert orig_shape[-1] == d
    out_dtype = x.dtype

    n = 1
    for s in orig_shape[:-1]:
        n *= s
    x2 = x.reshape(n, d).astype(compute_dtype)
    if d_pad != d:                         # zero K padding: required for accumulation
        x2 = jnp.pad(x2, ((0, 0), (0, d_pad - d)))

    # Row tile: multiple of 16 (bf16 sublane packing). No N padding: the grid
    # uses cdiv and the last row block overhangs (masked store, rows independent).
    tm = min(block_n, _round_up(n, 16))
    grid = (pl.cdiv(n, tm), h_pad // th, d_pad // tk)

    in_item = jnp.dtype(compute_dtype).itemsize
    out_item = jnp.dtype(out_dtype).itemsize
    vmem_est = (2 * tm * tk * in_item            # x double buffer
                + 2 * tk * 2 * th * in_item      # fused weight double buffer
                + 2 * 2 * th * 4                 # bias double buffer
                + 2 * tm * th * out_item         # output double buffer
                + tm * 2 * th * 4)               # f32 accumulator
    vmem_limit = int(min(max(2 * vmem_est, 32 * 1024 * 1024), 48 * 1024 * 1024))

    cost = pl.CostEstimate(
        flops=2 * n * d_pad * 2 * h_pad,
        transcendentals=n * h_pad,
        bytes_accessed=(n * d_pad * in_item
                        + grid[0] * d_pad * 2 * h_pad * in_item
                        + n * h_pad * out_item),
    )

    out = pl.pallas_call(
        _glu_kernel,
        out_shape=jax.ShapeDtypeStruct((n, h_pad), out_dtype),
        grid_spec=pltpu.PrefetchScalarGridSpec(
            num_scalar_prefetch=0,
            grid=grid,
            in_specs=[
                pl.BlockSpec((tm, tk), lambda i, j, k: (i, k)),        # x tile
                pl.BlockSpec((tk, 2 * th), lambda i, j, k: (k, j)),    # fused W tile
                pl.BlockSpec((1, 2 * th), lambda i, j, k: (0, j)),     # fused bias
            ],
            out_specs=pl.BlockSpec((tm, th), lambda i, j, k: (i, j)),
            scratch_shapes=[pltpu.VMEM((tm, 2 * th), jnp.float32)],
        ),
        compiler_params=pltpu.CompilerParams(
            dimension_semantics=("parallel", "parallel", "arbitrary"),
            vmem_limit_bytes=vmem_limit,
        ),
        cost_estimate=cost,
    )(x2, wf, bf)

    if h_pad != h:
        out = out[:, :h]
    return out.reshape(*orig_shape[:-1], h)


# ----------------------------------------------------------------------------
# Parameter init mirroring the PyTorch module (xavier_uniform weight, zero bias)
# ----------------------------------------------------------------------------
def init_glu_params(input_size: int, hidden_size: int, key):
    h = hidden_size or input_size
    fan_in, fan_out = input_size, 2 * h
    bound = math.sqrt(6.0 / (fan_in + fan_out))
    w = jax.random.uniform(key, (2 * h, input_size), jnp.float32, -bound, bound)
    b = jnp.zeros((2 * h,), jnp.float32)
    return w, b


def glu_reference(x, weight, bias, compute_dtype=jnp.bfloat16):
    """Pure-JAX reference: same bf16-input / f32-accumulation numerics."""
    h = weight.shape[0] // 2
    y = jnp.dot(x.astype(compute_dtype), weight.T.astype(compute_dtype),
                preferred_element_type=jnp.float32) + bias
    return (y[..., :h] * jax.nn.sigmoid(y[..., h:])).astype(x.dtype)


if __name__ == "__main__":
    key = jax.random.PRNGKey(0)

    # ---- primary example: batch=2, seq=8, input_size=32, hidden=32 ----------
    B, T, D = 2, 8, 32
    H = 32  # hidden_size defaults to input_size in the module
    kx, kw = jax.random.split(key)
    x = jax.random.normal(kx, (B, T, D), dtype=jnp.float32)
    w, b = init_glu_params(D, H, kw)

    params = prepare_glu_params(w, b)           # hoisted, one-time layout prep
    out = jax.block_until_ready(gated_linear_unit(x, params))
    ref = glu_reference(x, w, b)
    assert out.shape == (B, T, H), out.shape
    assert jnp.allclose(out, ref, atol=2e-3, rtol=2e-3), float(
        jnp.max(jnp.abs(out - ref))
    )

    # ---- secondary check: exercises K-tiling, H-tiling and row overhang -----
    N2, D2, H2 = 300, 768, 1024
    kx2, kw2 = jax.random.split(jax.random.fold_in(key, 7))
    x2 = jax.random.normal(kx2, (N2, D2), dtype=jnp.float32)
    w2, b2 = init_glu_params(D2, H2, kw2)
    params2 = prepare_glu_params(w2, b2, block_h=512, block_k=512)
    out2 = jax.block_until_ready(gated_linear_unit(x2, params2))
    ref2 = glu_reference(x2, w2, b2)
    assert out2.shape == (N2, H2), out2.shape
    assert jnp.allclose(out2, ref2, atol=5e-3, rtol=5e-3), float(
        jnp.max(jnp.abs(out2 - ref2))
    )

    print("KERNEL_OK")
</pallas_src>

<mosaic_0001>
module attributes {stable_mosaic.version = 11 : i64} {
  func.func @_glu_kernel(%arg0: i32, %arg1: i32, %arg2: i32, %arg3: memref<16x32xbf16, #tpu.memory_space<vmem>>, %arg4: memref<32x64xbf16, #tpu.memory_space<vmem>>, %arg5: memref<1x64xf32, #tpu.memory_space<vmem>>, %arg6: memref<16x32xf32, #tpu.memory_space<vmem>>, %arg7: memref<16x64xf32, #tpu.memory_space<vmem>>) attributes {dimension_semantics = [#tpu.dimension_semantics<parallel>, #tpu.dimension_semantics<parallel>, #tpu.dimension_semantics<arbitrary>], iteration_bounds = array<i64: 1, 1, 1>, scalar_prefetch = 0 : i64, scratch_operands = 1 : i64, tpu.core_type = #tpu.core_type<tc>, window_params = [{transform_indices = @transform_0, window_bounds = array<i64: 16, 32>}, {transform_indices = @transform_1, window_bounds = array<i64: 32, 64>}, {transform_indices = @transform_2, window_bounds = array<i64: 1, 64>}, {transform_indices = @transform_3, window_bounds = array<i64: 16, 32>}]} {
    %c0_i32 = arith.constant 0 : i32
    %0 = arith.cmpi eq, %arg2, %c0_i32 : i32
    %1 = arith.extui %0 : i1 to i32
    %c0_i32_0 = arith.constant 0 : i32
    %2 = arith.cmpi ne, %1, %c0_i32_0 : i32
    scf.if %2 {
      %cst_10 = arith.constant 0.000000e+00 : f32
      %12 = vector.broadcast %cst_10 : f32 to vector<16x64xf32>
      %c0_11 = arith.constant 0 : index
      %c0_12 = arith.constant 0 : index
      %13 = vector.load %arg7[%c0_11, %c0_12] : memref<16x64xf32, #tpu.memory_space<vmem>>, vector<16x64xf32>
      tpu.vector_store %arg7[%c0_11, %c0_12], %12 {strides = array<i32>} : memref<16x64xf32, #tpu.memory_space<vmem>>, vector<16x64xf32>,
    } else {
    }
    %c0 = arith.constant 0 : index
    %c0_1 = arith.constant 0 : index
    %3 = vector.load %arg7[%c0, %c0_1] : memref<16x64xf32, #tpu.memory_space<vmem>>, vector<16x64xf32>
    %c0_2 = arith.constant 0 : index
    %c0_3 = arith.constant 0 : index
    %4 = vector.load %arg3[%c0_2, %c0_3] : memref<16x32xbf16, #tpu.memory_space<vmem>>, vector<16x32xbf16>
    %c0_4 = arith.constant 0 : index
    %c0_5 = arith.constant 0 : index
    %5 = vector.load %arg4[%c0_4, %c0_5] : memref<32x64xbf16, #tpu.memory_space<vmem>>, vector<32x64xbf16>
    %cst = arith.constant dense<0.000000e+00> : vector<16x64xf32>
    %6 = tpu.matmul %4, %5, %cst {dimension_numbers = #tpu.dot_dimension_numbers<[1], [0], [0], [1], [0, 0, 1, 1], [], []>} : vector<16x32xbf16>, vector<32x64xbf16>, vector<16x64xf32> -> vector<16x64xf32>
    %7 = arith.addf %3, %6 : vector<16x64xf32>
    %c0_6 = arith.constant 0 : index
    %c0_7 = arith.constant 0 : index
    %8 = vector.load %arg7[%c0_6, %c0_7] : memref<16x64xf32, #tpu.memory_space<vmem>>, vector<16x64xf32>
    tpu.vector_store %arg7[%c0_6, %c0_7], %7 {strides = array<i32>} : memref<16x64xf32, #tpu.memory_space<vmem>>, vector<16x64xf32>,
    %c0_i32_8 = arith.constant 0 : i32
    %9 = arith.cmpi eq, %arg2, %c0_i32_8 : i32
    %10 = arith.extui %9 : i1 to i32
    %c0_i32_9 = arith.constant 0 : i32
    %11 = arith.cmpi ne, %10, %c0_i32_9 : i32
    scf.if %11 {
      %c0_10 = arith.constant 0 : index
      %c0_11 = arith.constant 0 : index
      %12 = vector.load %arg7[%c0_10, %c0_11] : memref<16x64xf32, #tpu.memory_space<vmem>>, vector<16x64xf32>
      %c0_12 = arith.constant 0 : index
      %c0_13 = arith.constant 0 : index
      %13 = vector.load %arg5[%c0_12, %c0_13] : memref<1x64xf32, #tpu.memory_space<vmem>>, vector<1x64xf32>
      %14 = vector.broadcast %13 : vector<1x64xf32> to vector<16x64xf32>
      %15 = arith.addf %12, %14 : vector<16x64xf32>
      %16 = vector.extract_strided_slice %15 {offsets = [0, 0], sizes = [16, 32], strides = [1, 1]} : vector<16x64xf32> to vector<16x32xf32>
      %17 = vector.extract_strided_slice %15 {offsets = [0, 32], sizes = [16, 32], strides = [1, 1]} : vector<16x64xf32> to vector<16x32xf32>
      %18 = arith.negf %17 : vector<16x32xf32>
      %19 = math.exp %18 : vector<16x32xf32>
      %cst_14 = arith.constant 1.000000e+00 : f32
      %20 = vector.broadcast %cst_14 : f32 to vector<16x32xf32>
      %21 = arith.addf %20, %19 : vector<16x32xf32>
      %22 = arith.divf %20, %21 : vector<16x32xf32>
      %23 = arith.mulf %16, %22 : vector<16x32xf32>
      %c0_15 = arith.constant 0 : index
      %c0_16 = arith.constant 0 : index
      %24 = vector.load %arg6[%c0_15, %c0_16] : memref<16x32xf32, #tpu.memory_space<vmem>>, vector<16x32xf32>
      tpu.vector_store %arg6[%c0_15, %c0_16], %23 {strides = array<i32>} : memref<16x32xf32, #tpu.memory_space<vmem>>, vector<16x32xf32>,
    } else {
    }
    return
  }
  func.func @transform_0(%arg0: i32, %arg1: i32, %arg2: i32) -> (i32, i32) {
    %c0_i32 = arith.constant 0 : i32
    return %arg0, %arg2 : i32, i32
  }
  func.func @transform_1(%arg0: i32, %arg1: i32, %arg2: i32) -> (i32, i32) {
    %c0_i32 = arith.constant 0 : i32
    return %arg2, %arg1 : i32, i32
  }
  func.func @transform_2(%arg0: i32, %arg1: i32, %arg2: i32) -> (i32, i32) {
    %c0_i32 = arith.constant 0 : i32
    %c0_i32_0 = arith.constant 0 : i32
    return %c0_i32, %arg1 : i32, i32
  }
  func.func @transform_3(%arg0: i32, %arg1: i32, %arg2: i32) -> (i32, i32) {
    %c0_i32 = arith.constant 0 : i32
    return %arg0, %arg1 : i32, i32
  }
}

</mosaic_0001>

<llo_original>
// kernel: tpu_custom_call.1
$region0: #{tpu_custom_call.1}
  #allocation0 [shape = 'u32[]', space=smem, size = 0x4, offset = 0x4, fixed_abs, tag = 'smem constant byte address 0x4 - core index']
  #allocation1 [shape = 'u32[144,128]{1,0:T(1,128)}', space=vmem, size = 0x12000, scoped, tag = 'internal scratch']
  #allocation2 [shape = 'f32[16,64]{1,0:T(8,128)}', space=vmem, size = 0x2000, scoped, tag = 'scratch operand']
  %s0 = inlined_call_operand.hbm [shape: bf16[16,32], index: 0, kind: input, shape index: {}]
  %s1 = inlined_call_operand.hbm [shape: bf16[32,64], index: 1, kind: input, shape index: {}]
  %s2 = inlined_call_operand.vmem [shape: f32[1,64], index: 2, kind: input, shape index: {}]
  %s3 = inlined_call_operand.hbm [shape: f32[16,32], index: 3, kind: output, shape index: {}]
  %s4 = sld [smem:[#allocation0]]
  $region38: #{tpu_custom_call.1} parent=0
    _
  %s6 = ssub.s32 1, %s4
  %s7 = scalar_select 0, %s6, %s4
  $region1: #{tpu_custom_call.1} parent=0
    #allocation3 [shape = 'u8[4096]{0}', space=vmem, size = 0x1000, scoped, tag = 'input window, operand 0, single buffered']
    #allocation4 [shape = 's32[1]{0}', space=sflag, size = 0x4, scoped, tag = 'scoped memory for tpu_custom_call.1']
    #allocation5 [shape = 's32[1]{0}', space=sflag, size = 0x4, scoped, tag = 'scoped memory for tpu_custom_call.1']
    #allocation6 [shape = 'u8[8192]{0}', space=vmem, size = 0x2000, scoped, tag = 'input window, operand 1, single buffered']
    #allocation7 [shape = 's32[1]{0}', space=sflag, size = 0x4, scoped, tag = 'scoped memory for tpu_custom_call.1']
    #allocation8 [shape = 'u8[8192]{0}', space=vmem, size = 0x2000, scoped, tag = 'output window, operand 0, single buffered']
    %8 = vsyncpa [#allocation4], 0
    %9 = vsyncpa [#allocation7], 0
    %10 = vsyncpa [#allocation5], 0
    // Predicated region
    $region2: #{tpu_custom_call.1} parent=1 // pred_check
      _
    $region3: #{tpu_custom_call.1} parent=1 // pred_check_branch
      %12 = sbr.rel (0) target = $region5
    $region4: #{tpu_custom_call.1} parent=1 // pred_region
      %s14 = ssub.s32 128, 128
      %15 = vsyncadd [#allocation4], %s14
      %s16 = sshll.u32 [#allocation3], 4
      %s17 = int_to_ptr.vmem [resolvable:$true] %s16
      %22 = dma.hbm_to_vmem [thread:$0]  %s0, 128, %s17, [#allocation4], 64, 64, 4
    $region5: #{tpu_custom_call.1} parent=1 // pred_fallthru
      _
    // Predicated region
    $region6: #{tpu_custom_call.1} parent=1 // pred_check
      _
    $region7: #{tpu_custom_call.1} parent=1 // pred_check_branch
      %24 = sbr.rel (0) target = $region9
    $region8: #{tpu_custom_call.1} parent=1 // pred_region
      %s26 = ssub.s32 256, 256
      %27 = vsyncadd [#allocation7], %s26
      %s28 = sshll.u32 [#allocation6], 4
      %s29 = int_to_ptr.vmem [resolvable:$true] %s28
      %34 = dma.hbm_to_vmem [thread:$0]  %s1, 256, %s29, [#allocation7], 64, 64, 4
    $region9: #{tpu_custom_call.1} parent=1 // pred_fallthru
      _
    // Predicated region
    $region10: #{tpu_custom_call.1} parent=1 // pred_check
      _
    $region11: #{tpu_custom_call.1} parent=1 // pred_check_branch
      %36 = sbr.rel (0) target = $region13
    $region12: #{tpu_custom_call.1} parent=1 // pred_region
      _
    $region13: #{tpu_custom_call.1} parent=1 // pred_fallthru
      _
    // Predicated region
    $region14: #{tpu_custom_call.1} parent=1 // pred_check
      _
    $region15: #{tpu_custom_call.1} parent=1 // pred_check_branch
      %38 = sbr.rel (0) target = $region17
    $region16: #{tpu_custom_call.1} parent=1 // pred_region
      %39 = dma.done [#allocation4], 128
    $region17: #{tpu_custom_call.1} parent=1 // pred_fallthru
      _
    // Predicated region
    $region18: #{tpu_custom_call.1} parent=1 // pred_check
      _
    $region19: #{tpu_custom_call.1} parent=1 // pred_check_branch
      %41 = sbr.rel (0) target = $region21
    $region20: #{tpu_custom_call.1} parent=1 // pred_region
      %42 = dma.done [#allocation7], 256
    $region21: #{tpu_custom_call.1} parent=1 // pred_fallthru
      _
    %p44 = scmp.eq.s32.totalorder 0, 0
    // Predicated region
    $region22: #{tpu_custom_call.1} parent=1 // pred_check
      %p45 = pneg %p44
    $region23: #{tpu_custom_call.1} parent=1 // pred_check_branch
      %47 = sbr.rel (%p45) target = $region25
    $region24: #{tpu_custom_call.1} parent=1 // pred_region
      %vm48 = vcmask 523264
      %49 = vst.msk [vmem:[#allocation2] sm:$0xff] %vm48, 0.0
      %50 = vst.msk [vmem:[#allocation2 + $0x8] sm:$0xff] %vm48, 0.0
    $region25: #{tpu_custom_call.1} parent=1 // pred_fallthru
      _
    %v51 = vld [vmem:[#allocation2] sm:$0xff]
    %v52 = vld [vmem:[#allocation2 + $0x8] sm:$0xff]
    %v53 = vld [vmem:[#allocation3] sm:$0xf]
    %v54 = vld [vmem:[#allocation3 + $0x4] sm:$0xf]
    %v55 = vld [vmem:[#allocation6] sm:$0xf]
    %v56 = vld [vmem:[#allocation6 + $0x4] sm:$0xf]
    %v57 = vld [vmem:[#allocation6 + $0x8] sm:$0xf]
    %v58 = vld [vmem:[#allocation6 + $0xc] sm:$0xf]
    %v61 = vunpack.c.l.b16 %v53
    %v62 = vunpack.c.l.b16 %v54
    %v63 = vpack.c.b16 %v62, %v61
    %v68 = vunpack.c.l.b16 %v55
    %v69 = vunpack.c.l.b16 %v56
    %v70 = vunpack.c.l.b16 %v57
    %v71 = vunpack.c.l.b16 %v58
    %v72 = vpack.c.b16 %v69, %v68
    %v73 = vpack.c.b16 %v71, %v70
    %vm76 = vcmask 261120
    %v78 = vsel %vm76, %v63, 0
    %80 = vmatprep.subr.bf16.mxu0 0
    %81 = vmatpush1.bf16.msra.mxu0 0
    %82 = vmatprep.subr.bf16.mxu0 0
    %83 = vmatpush1.bf16.msra.mxu0 0
    %84 = vmatprep.subr.bf16.mxu0 0
    %85 = vmatpush1.bf16.msra.mxu0 0
    %86 = vmatprep.subr.bf16.mxu0 0
    %87 = vmatpush1.bf16.msra.mxu0 0
    %88 = vmatprep.subr.bf16.mxu0 0
    %89 = vmatpush1.bf16.msra.mxu0 0
    %90 = vmatprep.subr.bf16.mxu0 0
    %91 = vmatpush1.bf16.msra.mxu0 0
    %92 = vmatprep.subr.bf16.mxu0 0
    %93 = vmatpush1.bf16.msra.mxu0 %v73
    %94 = vmatprep.subr.bf16.mxu0 0
    %95 = vmatpush1.bf16.msra.mxu0 %v72
    %96 = vmatprep.subr.bf16.mxu0 0
    %97 = vmatpush2.bf16.msra.mxu0 0
    %98 = vmatprep.subr.bf16.mxu0 0
    %99 = vmatpush2.bf16.msra.mxu0 0
    %100 = vmatprep.subr.bf16.mxu0 0
    %101 = vmatpush2.bf16.msra.mxu0 0
    %102 = vmatprep.subr.bf16.mxu0 0
    %103 = vmatpush2.bf16.msra.mxu0 0
    %104 = vmatprep.subr.bf16.mxu0 0
    %105 = vmatpush2.bf16.msra.mxu0 0
    %106 = vmatprep.subr.bf16.mxu0 0
    %107 = vmatpush2.bf16.msra.mxu0 0
    %108 = vmatprep.subr.bf16.mxu0 0
    %109 = vmatpush2.bf16.msra.mxu0 0
    %110 = vmatprep.subr.bf16.mxu0 0
    %111 = vmatpush2.bf16.msra.mxu0 0
    %112 = vmatprep.mubr.bf16.mxu0 0
    %113 = vmatmul.mubr.bf16.gmra.mxu0 %v78
    %v114 = vpop.f32.mrf.mxu0
    %v115 = vadd.f32 0.0, %v114
    %v116 = vpop.f32.mrf.mxu0
    %v117 = vpop.f32.mrf.mxu0
    %v118 = vadd.f32 0.0, %v117
    %v119 = vpop.f32.mrf.mxu0
    %120 = vdwg.mxu0
    %v121 = vadd.f32 %v51, %v115
    %v122 = vadd.f32 %v52, %v118
    %vm123 = vcmask 523264
    %124 = vst.msk [vmem:[#allocation2] sm:$0xff] %vm123, %v121
    %125 = vst.msk [vmem:[#allocation2 + $0x8] sm:$0xff] %vm123, %v122
    // Predicated region
    $region26: #{tpu_custom_call.1} parent=1 // pred_check
      %p126 = pneg %p44
    $region27: #{tpu_custom_call.1} parent=1 // pred_check_branch
      %128 = sbr.rel (%p126) target = $region29
    $region28: #{tpu_custom_call.1} parent=1 // pred_region
      %v129 = vld [vmem:[#allocation2] sm:$0xff]
      %v130 = vld [vmem:[#allocation2 + $0x8] sm:$0xff]
      %v131 = vld [vmem:[%s2] sm:$0x1]
      %v133 = vlaneseq
      %v134 = vshrl.u32 %v133, 7
      %v135 = vsub.s32 0, %v134
      %v136 = vrot.slane %v131, %v135
      %v138 = vadd.f32 %v129, %v136
      %v139 = vadd.f32 %v130, %v136
      %v140 = vxor.u32 %v138, 2147483648
      %v141 = vxor.u32 %v139, 2147483648
      %v142 = vmul.f32 %v140, 1.442695
      %v143 = vpow.pop %v142
      %v144 = vmul.f32 %v141, 1.442695
      %v145 = vpow.pop %v144
      %v146 = vadd.f32 %v143, 1.0
      %v147 = vadd.f32 %v145, 1.0
      %v148 = vrcp.pop %v146
      %v149 = vmul.f32 1.0, %v148
      %v150 = vrcp.pop %v147
      %v151 = vmul.f32 1.0, %v150
      %154 = vrot.lane.b32.xlu0 %v149, 96
      %v155 = vpop.permute.xlu0 %154
      %156 = vrot.lane.b32.xlu0 %v151, 96
      %v157 = vpop.permute.xlu0 %156
      %v160 = vmul.f32 %v138, %v155
      %v161 = vmul.f32 %v139, %v157
      %162 = vst.msk [vmem:[#allocation8] sm:$0xff] %vm76, %v160
      %163 = vst.msk [vmem:[#allocation8 + $0x8] sm:$0xff] %vm76, %v161
    $region29: #{tpu_custom_call.1} parent=1 // pred_fallthru
      _
    // Predicated region
    $region30: #{tpu_custom_call.1} parent=1 // pred_check
      _
    $region31: #{tpu_custom_call.1} parent=1 // pred_check_branch
      %165 = sbr.rel (0) target = $region33
    $region32: #{tpu_custom_call.1} parent=1 // pred_region
      %s167 = ssub.s32 256, 256
      %168 = vsyncadd [#allocation5], %s167
      %s169 = sshll.u32 [#allocation8], 4
      %s170 = int_to_ptr.vmem [resolvable:$true] %s169
      %175 = dma.vmem_to_hbm [thread:$0]  %s170, 256, %s3, [#allocation5], 128, 128, 8
    $region33: #{tpu_custom_call.1} parent=1 // pred_fallthru
      _
    // Predicated region
    $region34: #{tpu_custom_call.1} parent=1 // pred_check
      _
    $region35: #{tpu_custom_call.1} parent=1 // pred_check_branch
      %177 = sbr.rel (0) target = $region37
    $region36: #{tpu_custom_call.1} parent=1 // pred_region
      %178 = dma.done [#allocation5], 256
    $region37: #{tpu_custom_call.1} parent=1 // pred_fallthru
      _
    %179 = vsyncpa [#allocation4], 1
    %180 = vsyncpa [#allocation7], 1
    %181 = vsyncpa [#allocation5], 1

</llo_original>
